<compile_context>
chip_gen: v5e
topology: v5e:2x2
jax: 0.10.0
libtpu: 0.0.40
codegen_flags: <defaults>
</compile_context>

<pallas_src>
import functools
import math

import jax
import jax.numpy as jnp
from jax import lax
from jax.experimental import pallas as pl
from jax.experimental.pallas import tpu as pltpu


def _pick_tile(n, target):
    """Largest divisor of n that is <= target and a multiple of 8 (or n)."""
    if n <= target:
        return n
    for t in range(min(target, n), 0, -1):
        if n % t == 0 and (t % 8 == 0 or t == n):
            return t
    return n


def _vmem_limit(nbytes):
    """Generation-aware VMEM limit: up to ~3/4 of physical VMEM."""
    cap = 64 * 1024 * 1024
    try:
        cap = int(getattr(pltpu.get_tpu_info(), "vmem_capacity_bytes", cap))
    except Exception:
        pass
    hi = (cap * 3) // 4                      # headroom for Mosaic-internal scratch
    want = max(int(1.5 * nbytes), 32 * 1024 * 1024)
    return int(min(want, hi))


def _exp_dtype_for(cdt):
    """bf16 exponentials on chips with a bf16 EUP (v6e/v7x); f32 otherwise."""
    if jnp.dtype(cdt) == jnp.dtype(jnp.float32):
        return jnp.float32
    try:
        kind = jax.devices()[0].device_kind.lower()
        if any(t in kind for t in ("v2", "v3", "v4", "v5")):
            return jnp.float32            # no bf16 EUP on these generations
    except Exception:
        pass
    return jnp.dtype(cdt)


# ---------------------------------------------------------------------------
# Pass 1: K / V projections (channel-packed, lane-dense outputs).
# ---------------------------------------------------------------------------
def _kv_proj_kernel(x_ref, wk_ref, wv_ref, bk_ref, bv_ref, k_ref, v_ref):
    x = x_ref[0]                                               # (TN, C)
    yk = jnp.dot(x, wk_ref[...], preferred_element_type=jnp.float32)
    k_ref[0] = (yk + bk_ref[...]).astype(k_ref.dtype)
    yv = jnp.dot(x, wv_ref[...], preferred_element_type=jnp.float32)
    v_ref[0] = (yv + bv_ref[...]).astype(v_ref.dtype)


# ---------------------------------------------------------------------------
# Pass 2: fused Q projection + flash attention (online softmax over key tiles)
# + output projection. Per-head scratch buffers -> no masked RMW slices.
# ---------------------------------------------------------------------------
def _flash_attn_fused_kernel(x_ref, k_ref, v_ref, wq_ref, bq_ref, wp_ref,
                             bp_ref, out_ref, q_scr, m_scr, l_scr, acc_scr, *,
                             num_heads, head_dim, compute_dtype, exp_dtype,
                             approx_recip):
    ki = pl.program_id(2)
    nk = pl.num_programs(2)
    H, D = num_heads, head_dim

    @pl.when(ki == 0)
    def _init():
        # Fused q projection (softmax scale pre-folded into wq / bq); unpack
        # the channel-packed q tile into per-head buffers once per (b, qi).
        qp = jnp.dot(x_ref[0], wq_ref[...], preferred_element_type=jnp.float32)
        qp = (qp + bq_ref[...]).astype(compute_dtype)          # (TQ, C)
        for h in range(H):
            q_scr[h] = qp[:, h * D:(h + 1) * D]
        m_scr[...] = jnp.full(m_scr.shape, -jnp.inf, m_scr.dtype)
        l_scr[...] = jnp.zeros(l_scr.shape, l_scr.dtype)
        acc_scr[...] = jnp.zeros(acc_scr.shape, acc_scr.dtype)

    for h in range(H):                                         # static unroll
        lo = h * D
        q_h = q_scr[h]                                         # (TQ, D)
        k_h = k_ref[0, :, lo:lo + D]                           # (TK, D)
        v_h = v_ref[0, :, lo:lo + D]                           # (TK, D)

        # Scores: contract head_dim directly (no k transpose through the XLU).
        s = lax.dot_general(q_h, k_h, (((1,), (1,)), ((), ())),
                            preferred_element_type=jnp.float32)  # (TQ, TK) f32

        m_prev = m_scr[h]                                      # (TQ, D) lane-replicated
        l_prev = l_scr[h]
        m_prev_row = jnp.max(m_prev, axis=-1, keepdims=True)   # (TQ, 1)
        m_cur = jnp.max(s, axis=-1, keepdims=True)             # (TQ, 1)
        m_row = jnp.maximum(m_prev_row, m_cur)                 # (TQ, 1)
        alpha = jnp.exp(m_prev_row - m_row)                    # (TQ, 1) tiny exp

        # Big exp stream: bf16 on v6e/v7x, f32 elsewhere / on the exact path.
        p = jnp.exp((s - m_row).astype(exp_dtype))             # (TQ, TK)
        sum_p = jnp.sum(p.astype(jnp.float32), axis=-1, keepdims=True)
        pv = jnp.dot(p.astype(compute_dtype), v_h,
                     preferred_element_type=jnp.float32)       # (TQ, D)

        # Full-buffer updates (no masked read-modify-write slices).
        l_scr[h] = alpha * l_prev + sum_p
        acc_scr[h] = alpha * acc_scr[h] + pv
        m_scr[h] = jnp.maximum(m_prev, m_cur)

    @pl.when(ki == nk - 1)
    def _finalize():
        acc_out = None
        for h in range(H):
            lo = h * D
            inv_l = pl.reciprocal(l_scr[h], approx=approx_recip)   # (TQ, D) EUP
            o_h = (acc_scr[h] * inv_l).astype(compute_dtype)       # (TQ, D)
            contrib = jnp.dot(o_h, wp_ref[lo:lo + D, :],
                              preferred_element_type=jnp.float32)  # (TQ, C)
            acc_out = contrib if acc_out is None else acc_out + contrib
        out_ref[0] = (acc_out + bp_ref[...]).astype(out_ref.dtype)


# ---------------------------------------------------------------------------
# Wrapper.
# ---------------------------------------------------------------------------
def attention(x, params, *, num_heads, compute_dtype=jnp.bfloat16,
              tile_q=128, tile_k=128, tile_n=512):
    B, N, C = x.shape
    if C % num_heads:
        raise ValueError("dim must be divisible by num_heads")
    head_dim = C // num_heads
    scale = float(head_dim) ** -0.5
    out_dtype = x.dtype
    cdt = jnp.dtype(compute_dtype)
    itm = cdt.itemsize
    out_itm = jnp.dtype(out_dtype).itemsize
    exp_dtype = _exp_dtype_for(cdt)

    w_qkv = params["w_qkv"]                    # (3C, C) torch nn.Linear layout
    b_qkv = params.get("b_qkv")
    if b_qkv is None:                          # qkv_bias=False
        b_qkv = jnp.zeros((3 * C,), jnp.float32)
    w_proj = params["w_proj"]                  # (C, C)
    b_proj = params["b_proj"]                  # (C,)

    # (C_in, C_out) weight layout; softmax scale folded into wq / bq (free).
    wq = (w_qkv[0 * C:1 * C].T * scale).astype(cdt)
    wk = w_qkv[1 * C:2 * C].T.astype(cdt)
    wv = w_qkv[2 * C:3 * C].T.astype(cdt)
    bq = (b_qkv[0 * C:1 * C] * scale).reshape(1, C).astype(jnp.float32)
    bk = b_qkv[1 * C:2 * C].reshape(1, C).astype(jnp.float32)
    bv = b_qkv[2 * C:3 * C].reshape(1, C).astype(jnp.float32)
    wp = w_proj.T.astype(cdt)
    bp = b_proj.reshape(1, C).astype(jnp.float32)

    x_c = x.astype(cdt)        # halves HBM reads of x on the bf16 path

    tn = _pick_tile(N, tile_n)
    tq = _pick_tile(N, tile_q)
    tk = _pick_tile(N, tile_k)

    # ------------------------- pass 1: k / v projection ----------------------
    kv_vmem = (2 * tn * C * itm                       # x tile (double-buffered)
               + 2 * 2 * tn * C * itm                 # k / v output tiles
               + 2 * 2 * (C * C * itm + C * 4))       # resident wk / wv + biases
    k, v = pl.pallas_call(
        _kv_proj_kernel,
        out_shape=tuple(jax.ShapeDtypeStruct((B, N, C), cdt) for _ in range(2)),
        grid=(B, N // tn),
        in_specs=[
            pl.BlockSpec((1, tn, C), lambda b, n: (b, n, 0)),     # x
            pl.BlockSpec((C, C), lambda b, n: (0, 0)),            # wk
            pl.BlockSpec((C, C), lambda b, n: (0, 0)),            # wv
            pl.BlockSpec((1, C), lambda b, n: (0, 0)),            # bk
            pl.BlockSpec((1, C), lambda b, n: (0, 0)),            # bv
        ],
        out_specs=tuple(pl.BlockSpec((1, tn, C), lambda b, n: (b, n, 0))
                        for _ in range(2)),
        compiler_params=pltpu.CompilerParams(
            dimension_semantics=("parallel", "parallel"),
            vmem_limit_bytes=_vmem_limit(kv_vmem)),
    )(x_c, wk, wv, bk, bv)

    # --------- pass 2: fused q proj + flash attention + output proj ----------
    dp = ((head_dim + 127) // 128) * 128              # lane-padded head_dim
    attn_vmem = (2 * tq * C * itm                     # x (q rows) tile
                 + 2 * 2 * tk * C * itm               # k / v tiles
                 + 2 * 2 * (C * C * itm + C * 4)      # resident wq / wp + biases
                 + 2 * tq * C * out_itm               # output tile
                 + num_heads * tq * dp * (itm + 3 * 4))   # q/m/l/acc scratch
    n_rereads = N // tq
    cost = pl.CostEstimate(
        flops=int(B * (4 * N * N * C + 4 * N * C * C)),
        transcendentals=int(B * num_heads * N * N),
        bytes_accessed=int(B * N * C * itm                       # x (q rows)
                           + 2 * B * N * C * itm * n_rereads     # k, v re-reads
                           + B * N * C * out_itm                 # output
                           + 2 * (C * C * itm + C * 4)),         # wq, wp
    )
    attn_kernel = functools.partial(
        _flash_attn_fused_kernel, num_heads=num_heads, head_dim=head_dim,
        compute_dtype=cdt, exp_dtype=exp_dtype,
        approx_recip=bool(cdt != jnp.dtype(jnp.float32)))
    out = pl.pallas_call(
        attn_kernel,
        out_shape=jax.ShapeDtypeStruct((B, N, C), out_dtype),
        grid=(B, N // tq, N // tk),
        in_specs=[
            pl.BlockSpec((1, tq, C), lambda b, qi, ki: (b, qi, 0)),   # x (q rows)
            pl.BlockSpec((1, tk, C), lambda b, qi, ki: (b, ki, 0)),   # k
            pl.BlockSpec((1, tk, C), lambda b, qi, ki: (b, ki, 0)),   # v
            pl.BlockSpec((C, C), lambda b, qi, ki: (0, 0)),           # wq (scaled)
            pl.BlockSpec((1, C), lambda b, qi, ki: (0, 0)),           # bq (scaled)
            pl.BlockSpec((C, C), lambda b, qi, ki: (0, 0)),           # wp
            pl.BlockSpec((1, C), lambda b, qi, ki: (0, 0)),           # bp
        ],
        out_specs=pl.BlockSpec((1, tq, C), lambda b, qi, ki: (b, qi, 0)),
        scratch_shapes=[
            pltpu.VMEM((num_heads, tq, head_dim), cdt),          # per-head q
            pltpu.VMEM((num_heads, tq, head_dim), jnp.float32),  # running max m
            pltpu.VMEM((num_heads, tq, head_dim), jnp.float32),  # running denom l
            pltpu.VMEM((num_heads, tq, head_dim), jnp.float32),  # accumulator
        ],
        compiler_params=pltpu.CompilerParams(
            dimension_semantics=("parallel", "parallel", "arbitrary"),
            vmem_limit_bytes=_vmem_limit(attn_vmem)),
        cost_estimate=cost,
    )(x_c, k, v, wq, bq, wp, bp)
    return out


# ---------------------------------------------------------------------------
# Pure-JAX reference mirroring the PyTorch forward exactly (f32).
# ---------------------------------------------------------------------------
def reference(x, params, *, num_heads):
    B, N, C = x.shape
    D = C // num_heads
    hp = jax.lax.Precision.HIGHEST
    b_qkv = params.get("b_qkv")
    if b_qkv is None:
        b_qkv = jnp.zeros((3 * C,), x.dtype)
    qkv = jnp.dot(x, params["w_qkv"].T, precision=hp) + b_qkv
    qkv = qkv.reshape(B, N, 3, num_heads, D).transpose(2, 0, 3, 1, 4)
    q, k, v = qkv[0], qkv[1], qkv[2]                    # (B, H, N, D)
    q = q * (float(D) ** -0.5)
    attn = jnp.einsum("bhnd,bhmd->bhnm", q, k, precision=hp)
    attn = jax.nn.softmax(attn.astype(jnp.float32), axis=-1).astype(q.dtype)
    o = jnp.einsum("bhnm,bhmd->bhnd", attn, v, precision=hp)
    o = o.transpose(0, 2, 1, 3).reshape(B, N, C)
    return jnp.dot(o, params["w_proj"].T, precision=hp) + params["b_proj"]


if __name__ == "__main__":
    B, N, C, H = 2, 256, 128, 8          # head_dim = 16
    key = jax.random.PRNGKey(0)
    kx, kw, kb, kwp, kbp = jax.random.split(key, 5)
    x = jax.random.normal(kx, (B, N, C), jnp.float32)

    bound = 1.0 / math.sqrt(C)           # nn.Linear default init
    params = dict(
        w_qkv=jax.random.uniform(kw, (3 * C, C), jnp.float32, -bound, bound),
        b_qkv=jax.random.uniform(kb, (3 * C,), jnp.float32, -bound, bound),
        w_proj=jax.random.uniform(kwp, (C, C), jnp.float32, -bound, bound),
        b_proj=jax.random.uniform(kbp, (C,), jnp.float32, -bound, bound),
    )

    ref = reference(x, params, num_heads=H)

    # Exact-math path: f32 MXU operands, f32 exp -> tight check vs. reference.
    out_f32 = jax.block_until_ready(
        attention(x, params, num_heads=H, compute_dtype=jnp.float32))
    assert out_f32.shape == (B, N, C)
    err32 = float(jnp.max(jnp.abs(out_f32 - ref)))
    assert jnp.allclose(out_f32, ref, rtol=1e-3, atol=1e-3), err32

    # Fast path: bf16 MXU operands / bf16 exp (where supported), f32 accum.
    out_bf16 = jax.block_until_ready(
        attention(x, params, num_heads=H, compute_dtype=jnp.bfloat16))
    assert out_bf16.shape == (B, N, C)
    errbf = float(jnp.max(jnp.abs(out_bf16 - ref)))
    assert jnp.allclose(out_bf16, ref, rtol=5e-2, atol=2e-2), errbf

    print("KERNEL_OK")
</pallas_src>

<mosaic_0001>
module attributes {stable_mosaic.version = 11 : i64} {
  func.func @_kv_proj_kernel(%arg0: i32, %arg1: i32, %arg2: memref<1x256x128xf32, #tpu.memory_space<vmem>>, %arg3: memref<128x128xf32, #tpu.memory_space<vmem>>, %arg4: memref<128x128xf32, #tpu.memory_space<vmem>>, %arg5: memref<1x128xf32, #tpu.memory_space<vmem>>, %arg6: memref<1x128xf32, #tpu.memory_space<vmem>>, %arg7: memref<1x256x128xf32, #tpu.memory_space<vmem>>, %arg8: memref<1x256x128xf32, #tpu.memory_space<vmem>>) attributes {dimension_semantics = [#tpu.dimension_semantics<parallel>, #tpu.dimension_semantics<parallel>], iteration_bounds = array<i64: 2, 1>, scalar_prefetch = 0 : i64, scratch_operands = 0 : i64, tpu.core_type = #tpu.core_type<tc>, window_params = [{transform_indices = @transform_0, window_bounds = array<i64: 1, 256, 128>}, {pipeline_mode = #tpu.pipeline_mode<synchronous>, transform_indices = @transform_1, window_bounds = array<i64: 128, 128>}, {pipeline_mode = #tpu.pipeline_mode<synchronous>, transform_indices = @transform_2, window_bounds = array<i64: 128, 128>}, {pipeline_mode = #tpu.pipeline_mode<synchronous>, transform_indices = @transform_3, window_bounds = array<i64: 1, 128>}, {pipeline_mode = #tpu.pipeline_mode<synchronous>, transform_indices = @transform_4, window_bounds = array<i64: 1, 128>}, {transform_indices = @transform_5, window_bounds = array<i64: 1, 256, 128>}, {transform_indices = @transform_6, window_bounds = array<i64: 1, 256, 128>}]} {
    %c0 = arith.constant 0 : index
    %c0_0 = arith.constant 0 : index
    %c0_1 = arith.constant 0 : index
    %0 = vector.load %arg2[%c0, %c0_0, %c0_1] : memref<1x256x128xf32, #tpu.memory_space<vmem>>, vector<1x256x128xf32>
    %1 = vector.shape_cast %0 : vector<1x256x128xf32> to vector<256x128xf32>
    %c0_2 = arith.constant 0 : index
    %c0_3 = arith.constant 0 : index
    %2 = vector.load %arg3[%c0_2, %c0_3] : memref<128x128xf32, #tpu.memory_space<vmem>>, vector<128x128xf32>
    %cst = arith.constant dense<0.000000e+00> : vector<256x128xf32>
    %3 = tpu.matmul %1, %2, %cst {dimension_numbers = #tpu.dot_dimension_numbers<[1], [0], [0], [1], [0, 0, 1, 1], [], []>} : vector<256x128xf32>, vector<128x128xf32>, vector<256x128xf32> -> vector<256x128xf32>
    %c0_4 = arith.constant 0 : index
    %c0_5 = arith.constant 0 : index
    %4 = vector.load %arg5[%c0_4, %c0_5] : memref<1x128xf32, #tpu.memory_space<vmem>>, vector<1x128xf32>
    %5 = vector.broadcast %4 : vector<1x128xf32> to vector<256x128xf32>
    %6 = arith.addf %3, %5 : vector<256x128xf32>
    %c0_6 = arith.constant 0 : index
    %c0_7 = arith.constant 0 : index
    %c0_8 = arith.constant 0 : index
    %7 = vector.load %arg7[%c0_6, %c0_7, %c0_8] : memref<1x256x128xf32, #tpu.memory_space<vmem>>, vector<1x256x128xf32>
    %8 = vector.shape_cast %7 : vector<1x256x128xf32> to vector<256x128xf32>
    %9 = vector.shape_cast %6 : vector<256x128xf32> to vector<1x256x128xf32>
    tpu.vector_store %arg7[%c0_6, %c0_7, %c0_8], %9 {strides = array<i32>} : memref<1x256x128xf32, #tpu.memory_space<vmem>>, vector<1x256x128xf32>,
    %c0_9 = arith.constant 0 : index
    %c0_10 = arith.constant 0 : index
    %10 = vector.load %arg4[%c0_9, %c0_10] : memref<128x128xf32, #tpu.memory_space<vmem>>, vector<128x128xf32>
    %cst_11 = arith.constant dense<0.000000e+00> : vector<256x128xf32>
    %11 = tpu.matmul %1, %10, %cst_11 {dimension_numbers = #tpu.dot_dimension_numbers<[1], [0], [0], [1], [0, 0, 1, 1], [], []>} : vector<256x128xf32>, vector<128x128xf32>, vector<256x128xf32> -> vector<256x128xf32>
    %c0_12 = arith.constant 0 : index
    %c0_13 = arith.constant 0 : index
    %12 = vector.load %arg6[%c0_12, %c0_13] : memref<1x128xf32, #tpu.memory_space<vmem>>, vector<1x128xf32>
    %13 = vector.broadcast %12 : vector<1x128xf32> to vector<256x128xf32>
    %14 = arith.addf %11, %13 : vector<256x128xf32>
    %c0_14 = arith.constant 0 : index
    %c0_15 = arith.constant 0 : index
    %c0_16 = arith.constant 0 : index
    %15 = vector.load %arg8[%c0_14, %c0_15, %c0_16] : memref<1x256x128xf32, #tpu.memory_space<vmem>>, vector<1x256x128xf32>
    %16 = vector.shape_cast %15 : vector<1x256x128xf32> to vector<256x128xf32>
    %17 = vector.shape_cast %14 : vector<256x128xf32> to vector<1x256x128xf32>
    tpu.vector_store %arg8[%c0_14, %c0_15, %c0_16], %17 {strides = array<i32>} : memref<1x256x128xf32, #tpu.memory_space<vmem>>, vector<1x256x128xf32>,
    return
  }
  func.func @transform_0(%arg0: i32, %arg1: i32) -> (i32, i32, i32) {
    %c0_i32 = arith.constant 0 : i32
    %c0_i32_0 = arith.constant 0 : i32
    return %arg0, %arg1, %c0_i32 : i32, i32, i32
  }
  func.func @transform_1(%arg0: i32, %arg1: i32) -> (i32, i32) {
    %c0_i32 = arith.constant 0 : i32
    %c0_i32_0 = arith.constant 0 : i32
    %c0_i32_1 = arith.constant 0 : i32
    return %c0_i32, %c0_i32_0 : i32, i32
  }
  func.func @transform_2(%arg0: i32, %arg1: i32) -> (i32, i32) {
    %c0_i32 = arith.constant 0 : i32
    %c0_i32_0 = arith.constant 0 : i32
    %c0_i32_1 = arith.constant 0 : i32
    return %c0_i32, %c0_i32_0 : i32, i32
  }
  func.func @transform_3(%arg0: i32, %arg1: i32) -> (i32, i32) {
    %c0_i32 = arith.constant 0 : i32
    %c0_i32_0 = arith.constant 0 : i32
    %c0_i32_1 = arith.constant 0 : i32
    return %c0_i32, %c0_i32_0 : i32, i32
  }
  func.func @transform_4(%arg0: i32, %arg1: i32) -> (i32, i32) {
    %c0_i32 = arith.constant 0 : i32
    %c0_i32_0 = arith.constant 0 : i32
    %c0_i32_1 = arith.constant 0 : i32
    return %c0_i32, %c0_i32_0 : i32, i32
  }
  func.func @transform_5(%arg0: i32, %arg1: i32) -> (i32, i32, i32) {
    %c0_i32 = arith.constant 0 : i32
    %c0_i32_0 = arith.constant 0 : i32
    return %arg0, %arg1, %c0_i32 : i32, i32, i32
  }
  func.func @transform_6(%arg0: i32, %arg1: i32) -> (i32, i32, i32) {
    %c0_i32 = arith.constant 0 : i32
    %c0_i32_0 = arith.constant 0 : i32
    return %arg0, %arg1, %c0_i32 : i32, i32, i32
  }
}

</mosaic_0001>

<llo_original>
// kernel: tpu_custom_call.1
$region0: #{tpu_custom_call.1}
  #allocation0 [shape = 'u32[]', space=smem, size = 0x4, offset = 0x4, fixed_abs, tag = 'smem constant byte address 0x4 - core index']
  #allocation1 [shape = 'u32[72,128]{1,0:T(1,128)}', space=vmem, size = 0x9000, scoped, tag = 'internal scratch']
  %s0 = inlined_call_operand.hbm [shape: f32[2,256,128], index: 0, kind: input, shape index: {}]
  %s1 = inlined_call_operand.hbm [shape: f32[128,128], index: 1, kind: input, shape index: {}]
  %s2 = inlined_call_operand.hbm [shape: f32[128,128], index: 2, kind: input, shape index: {}]
  %s3 = inlined_call_operand.vmem [shape: f32[1,128], index: 3, kind: input, shape index: {}]
  %s4 = inlined_call_operand.vmem [shape: f32[1,128], index: 4, kind: input, shape index: {}]
  %s5 = inlined_call_operand.hbm [shape: f32[2,256,128], index: 5, kind: output, shape index: {0}]
  %s6 = inlined_call_operand.hbm [shape: f32[2,256,128], index: 6, kind: output, shape index: {1}]
  %7 = xla_tuple %s5, %s6
  %s8 = sld [smem:[#allocation0]]
  $region73: #{tpu_custom_call.1} parent=0
    _
  %s10 = ssub.s32 1, %s8
  %s11 = scalar_select 0, %s10, %s8
  $region1: #{tpu_custom_call.1} parent=0
    #allocation2 [shape = 'u8[262144]{0}', space=vmem, size = 0x40000, scoped, tag = 'input window, operand 0']
    #allocation3 [shape = 's32[2]{0}', space=sflag, size = 0x8, scoped, tag = 'scoped memory for tpu_custom_call.1']
    #allocation4 [shape = 's32[2]{0}', space=sflag, size = 0x8, scoped, tag = 'scoped memory for tpu_custom_call.1']
    #allocation5 [shape = 'u8[65536]{0}', space=vmem, size = 0x10000, scoped, tag = 'input window, operand 1, single buffered']
    #allocation6 [shape = 's32[1]{0}', space=sflag, size = 0x4, scoped, tag = 'scoped memory for tpu_custom_call.1']
    #allocation7 [shape = 'u8[65536]{0}', space=vmem, size = 0x10000, scoped, tag = 'input window, operand 2, single buffered']
    #allocation8 [shape = 'u8[262144]{0}', space=vmem, size = 0x40000, scoped, tag = 'output window, operand 0']
    #allocation9 [shape = 'u8[262144]{0}', space=vmem, size = 0x40000, scoped, tag = 'output window, operand 1']
    #allocation10 [shape = 's32[2]{0}', space=sflag, size = 0x8, scoped, tag = 'scoped memory for tpu_custom_call.1']
    %12 = vsyncpa [#allocation3], 0
    %s13 = scalar_lea.sflag [#allocation3], 1
    %14 = vsyncpa %s13, 0
    %15 = vsyncpa [#allocation6], 0
    %16 = vsyncpa [#allocation4], 0
    %s17 = scalar_lea.sflag [#allocation4], 1
    %18 = vsyncpa %s17, 0
    %19 = vsyncpa [#allocation10], 0
    %s20 = scalar_lea.sflag [#allocation10], 1
    %21 = vsyncpa %s20, 0
    loop: start=0, step=1, limit=4
    $region2: #{tpu_custom_call.1} parent=1 // loop_pre_header
      _
    $region3: #{tpu_custom_call.1} parent=1 // loop_header
      %s23 = sphi 0, %s27
      %p24 = scmp.ge.s32.totalorder %s23, 4
      %s30 = sphi 0, %s42
      %s31 = sphi 0, %s38
      %s32 = sphi 0, %s30
      %s33 = sphi 0, %s31
      %s34 = sphi 0, %s32
      %s35 = sphi 0, %s33
      %s47 = sphi 0, %s49
      %s50 = sphi 0, %s47
      %s51 = sphi 0, %s50
      %s67 = sphi 0, %s51
      %s71 = sphi 0, %s71
      %s73 = sphi 0, %s71
      %s74 = sphi 0, %s73
      %s88 = sphi 0, %s74
      %s92 = sphi 0, %s92
      %s94 = sphi 0, %s92
      %s95 = sphi 0, %s94
      %s109 = sphi 0, %s95
      %s113 = sphi 0, %s113
      %s115 = sphi 0, %s113
      %s116 = sphi 0, %s115
      %s130 = sphi 0, %s116
      %s134 = sphi 0, %s134
      %s136 = sphi 0, %s134
      %s137 = sphi 0, %s136
      %s151 = sphi 0, %s137
      %s159 = sphi 0, %s161
      %s162 = sphi 0, %s159
      %s163 = sphi 0, %s162
      %s179 = sphi 0, %s163
      %s187 = sphi 0, %s189
      %s190 = sphi 0, %s187
      %s191 = sphi 0, %s190
      %s207 = sphi 0, %s191
    $region4: #{tpu_custom_call.1} parent=1 // loop_header_branch
      %26 = sbr.rel (%p24) target = $region8
    $region5: #{tpu_custom_call.1} parent=1 // loop_body
      %s28 = ssub.s32 %s23, 1
      %s29 = ssub.s32 %s23, 2
      %s36 = sadd.s32 1, %s31
      %p37 = scmp.ge.s32.totalorder %s36, 1
      %s38 = scalar_select %p37, 0, %s36
      %s39 = sadd.s32 1, %s30
      %s40 = scalar_select %p37, %s39, %s30
      %p41 = scmp.ge.s32.totalorder %s40, 2
      %s42 = scalar_select %p41, 0, %s40
      %s43 = ssub.s32 %s30, %s42
      %s44 = ssub.s32 %s31, %s38
      %s45 = sor.u32 %s43, %s44
      %p46 = scmp.eq.s32.totalorder %s45, 0
      %s48 = sadd.s32 %s47, 1
      %s49 = scalar_select %p46, %s47, %s48
      %p52 = pneg %p46
      %p53 = scmp.eq.s32.totalorder %s23, 1
      %p54 = por %p52, %p53
      %p55 = scmp.ne.s32.totalorder %s47, %s50
      %p56 = scmp.eq.s32.totalorder %s23, 0
      %p57 = por %p55, %p56
      %p58 = scmp.ne.s32.totalorder %s47, %s50
      %p59 = scmp.eq.s32.totalorder %s28, 1
      %p60 = por %p58, %p59
      %p61 = scmp.ne.s32.totalorder %s50, %s51
      %p62 = scmp.eq.s32.totalorder %s28, 0
      %p63 = por %p61, %p62
      %p64 = scmp.ne.s32.totalorder %s50, %s51
      %p65 = scmp.eq.s32.totalorder %s29, 1
      %p66 = por %p64, %p65
      %p68 = scmp.ne.s32.totalorder %s51, %s67
      %p69 = scmp.eq.s32.totalorder %s29, 0
      %p70 = por %p68, %p69
      %s72 = sadd.s32 %s71, 1
      %p75 = scmp.eq.s32.totalorder %s23, 1
      %p76 = scmp.ne.s32.totalorder %s71, %s73
      %p77 = scmp.eq.s32.totalorder %s23, 0
      %p78 = por %p76, %p77
      %p79 = scmp.ne.s32.totalorder %s71, %s73
      %p80 = scmp.eq.s32.totalorder %s28, 1
      %p81 = por %p79, %p80
      %p82 = scmp.ne.s32.totalorder %s73, %s74
      %p83 = scmp.eq.s32.totalorder %s28, 0
      %p84 = por %p82, %p83
      %p85 = scmp.ne.s32.totalorder %s73, %s74
      %p86 = scmp.eq.s32.totalorder %s29, 1
      %p87 = por %p85, %p86
      %p89 = scmp.ne.s32.totalorder %s74, %s88
      %p90 = scmp.eq.s32.totalorder %s29, 0
      %p91 = por %p89, %p90
      %s93 = sadd.s32 %s92, 1
      %p96 = scmp.eq.s32.totalorder %s23, 1
      %p97 = scmp.ne.s32.totalorder %s92, %s94
      %p98 = scmp.eq.s32.totalorder %s23, 0
      %p99 = por %p97, %p98
      %p100 = scmp.ne.s32.totalorder %s92, %s94
      %p101 = scmp.eq.s32.totalorder %s28, 1
      %p102 = por %p100, %p101
      %p103 = scmp.ne.s32.totalorder %s94, %s95
      %p104 = scmp.eq.s32.totalorder %s28, 0
      %p105 = por %p103, %p104
      %p106 = scmp.ne.s32.totalorder %s94, %s95
      %p107 = scmp.eq.s32.totalorder %s29, 1
      %p108 = por %p106, %p107
      %p110 = scmp.ne.s32.totalorder %s95, %s109
      %p111 = scmp.eq.s32.totalorder %s29, 0
      %p112 = por %p110, %p111
      %s114 = sadd.s32 %s113, 1
      %p117 = scmp.eq.s32.totalorder %s23, 1
      %p118 = scmp.ne.s32.totalorder %s113, %s115
      %p119 = scmp.eq.s32.totalorder %s23, 0
      %p120 = por %p118, %p119
      %p121 = scmp.ne.s32.totalorder %s113, %s115
      %p122 = scmp.eq.s32.totalorder %s28, 1
      %p123 = por %p121, %p122
      %p124 = scmp.ne.s32.totalorder %s115, %s116
      %p125 = scmp.eq.s32.totalorder %s28, 0
      %p126 = por %p124, %p125
      %p127 = scmp.ne.s32.totalorder %s115, %s116
      %p128 = scmp.eq.s32.totalorder %s29, 1
      %p129 = por %p127, %p128
      %p131 = scmp.ne.s32.totalorder %s116, %s130
      %p132 = scmp.eq.s32.totalorder %s29, 0
      %p133 = por %p131, %p132
      %s135 = sadd.s32 %s134, 1
      %p138 = scmp.eq.s32.totalorder %s23, 1
      %p139 = scmp.ne.s32.totalorder %s134, %s136
      %p140 = scmp.eq.s32.totalorder %s23, 0
      %p141 = por %p139, %p140
      %p142 = scmp.ne.s32.totalorder %s134, %s136
      %p143 = scmp.eq.s32.totalorder %s28, 1
      %p144 = por %p142, %p143
      %p145 = scmp.ne.s32.totalorder %s136, %s137
      %p146 = scmp.eq.s32.totalorder %s28, 0
      %p147 = por %p145, %p146
      %p148 = scmp.ne.s32.totalorder %s136, %s137
      %p149 = scmp.eq.s32.totalorder %s29, 1
      %p150 = por %p148, %p149
      %p152 = scmp.ne.s32.totalorder %s137, %s151
      %p153 = scmp.eq.s32.totalorder %s29, 0
      %p154 = por %p152, %p153
      %s155 = ssub.s32 %s30, %s42
      %s156 = ssub.s32 %s31, %s38
      %s157 = sor.u32 %s155, %s156
      %p158 = scmp.eq.s32.totalorder %s157, 0
      %s160 = sadd.s32 %s159, 1
      %s161 = scalar_select %p158, %s159, %s160
      %p164 = pneg %p158
      %p165 = scmp.eq.s32.totalorder %s23, 1
      %p166 = por %p164, %p165
      %p167 = scmp.ne.s32.totalorder %s159, %s162
      %p168 = scmp.eq.s32.totalorder %s23, 0
      %p169 = por %p167, %p168
      %p170 = scmp.ne.s32.totalorder %s159, %s162
      %p171 = scmp.eq.s32.totalorder %s28, 1
      %p172 = por %p170, %p171
      %p173 = scmp.ne.s32.totalorder %s162, %s163
      %p174 = scmp.eq.s32.totalorder %s28, 0
      %p175 = por %p173, %p174
      %p176 = scmp.ne.s32.totalorder %s162, %s163
      %p177 = scmp.eq.s32.totalorder %s29, 1
      %p178 = por %p176, %p177
      %p180 = scmp.ne.s32.totalorder %s163, %s179
      %p181 = scmp.eq.s32.totalorder %s29, 0
      %p182 = por %p180, %p181
      %s183 = ssub.s32 %s30, %s42
      %s184 = ssub.s32 %s31, %s38
      %s185 = sor.u32 %s183, %s184
      %p186 = scmp.eq.s32.totalorder %s185, 0
      %s188 = sadd.s32 %s187, 1
      %s189 = scalar_select %p186, %s187, %s188
      %p192 = pneg %p186
      %p193 = scmp.eq.s32.totalorder %s23, 1
      %p194 = por %p192, %p193
      %p195 = scmp.ne.s32.totalorder %s187, %s190
      %p196 = scmp.eq.s32.totalorder %s23, 0
      %p197 = por %p195, %p196
      %p198 = scmp.ne.s32.totalorder %s187, %s190
      %p199 = scmp.eq.s32.totalorder %s28, 1
      %p200 = por %p198, %p199
      %p201 = scmp.ne.s32.totalorder %s190, %s191
      %p202 = scmp.eq.s32.totalorder %s28, 0
      %p203 = por %p201, %p202
      %p204 = scmp.ne.s32.totalorder %s190, %s191
      %p205 = scmp.eq.s32.totalorder %s29, 1
      %p206 = por %p204, %p205
      %p208 = scmp.ne.s32.totalorder %s191, %s207
      %p209 = scmp.eq.s32.totalorder %s29, 0
      %p210 = por %p208, %p209
      %p211 = scmp.le.s32.totalorder 1, %s23
      %p212 = scmp.lt.s32.totalorder %s23, 3
      %p213 = pnand %p211, %p212
      %p214 = pneg %p213
      // Predicated region
      $region9: #{tpu_custom_call.1} parent=5 // pred_check
        _
      $region10: #{tpu_custom_call.1} parent=5 // pred_check_branch
        %216 = sbr.rel (%p213) target = $region12
      $region11: #{tpu_custom_call.1} parent=5 // pred_region
        %s217 = ssub.s32 %s23, 1
        // Predicated region
        $region13: #{tpu_custom_call.1} parent=11 // pred_check
          %p218 = pneg %p84
        $region14: #{tpu_custom_call.1} parent=11 // pred_check_branch
          %220 = sbr.rel (%p218) target = $region16
        $region15: #{tpu_custom_call.1} parent=11 // pred_region
          %222 = vsyncadd [#allocation6], 0
          %s223 = sshll.u32 %s1, 4
          %s224 = int_to_ptr.hbm [resolvable:$true] %s223
          %s225 = sshll.u32 [#allocation5], 4
          %s226 = int_to_ptr.vmem [resolvable:$true] %s225
          %231 = dma.hbm_to_vmem [thread:$0]  %s224, 2048, %s226, [#allocation6], 128, 128, 8
        $region16: #{tpu_custom_call.1} parent=11 // pred_fallthru
          _
        // Predicated region
        $region17: #{tpu_custom_call.1} parent=11 // pred_check
          %p232 = pneg %p105
        $region18: #{tpu_custom_call.1} parent=11 // pred_check_branch
          %234 = sbr.rel (%p232) target = $region20
        $region19: #{tpu_custom_call.1} parent=11 // pred_region
          %236 = vsyncadd [#allocation6], 0
          %s237 = sshll.u32 %s2, 4
          %s238 = int_to_ptr.hbm [resolvable:$true] %s237
          %s239 = sshll.u32 [#allocation7], 4
          %s240 = int_to_ptr.vmem [resolvable:$true] %s239
          %245 = dma.hbm_to_vmem [thread:$0]  %s238, 2048, %s240, [#allocation6], 128, 128, 8
        $region20: #{tpu_custom_call.1} parent=11 // pred_fallthru
          _
        // Predicated region
        $region21: #{tpu_custom_call.1} parent=11 // pred_check
          %p246 = pneg %p126
        $region22: #{tpu_custom_call.1} parent=11 // pred_check_branch
          %248 = sbr.rel (%p246) target = $region24
        $region23: #{tpu_custom_call.1} parent=11 // pred_region
          _
        $region24: #{tpu_custom_call.1} parent=11 // pred_fallthru
          _
        // Predicated region
        $region25: #{tpu_custom_call.1} parent=11 // pred_check
          %p249 = pneg %p147
        $region26: #{tpu_custom_call.1} parent=11 // pred_check_branch
          %251 = sbr.rel (%p249) target = $region28
        $region27: #{tpu_custom_call.1} parent=11 // pred_region
          _
        $region28: #{tpu_custom_call.1} parent=11 // pred_fallthru
          _
      $region12: #{tpu_custom_call.1} parent=5 // pred_fallthru
        _
      %p252 = scmp.lt.s32.totalorder %s23, 2
      // Predicated region
      $region29: #{tpu_custom_call.1} parent=5 // pred_check
        %p253 = pneg %p252
      $region30: #{tpu_custom_call.1} parent=5 // pred_check_branch
        %255 = sbr.rel (%p253) target = $region32
      $region31: #{tpu_custom_call.1} parent=5 // pred_region
        // Predicated region
        $region33: #{tpu_custom_call.1} parent=31 // pred_check
          %p256 = pneg %p57
        $region34: #{tpu_custom_call.1} parent=31 // pred_check_branch
          %258 = sbr.rel (%p256) target = $region36
        $region35: #{tpu_custom_call.1} parent=31 // pred_region
          %s259 = sand.u32 %s47, 1
          %s260 = scalar_lea.sflag [#allocation3], %s259
          %s261 = sand.u32 %s47, 1
          %s262 = smul.addr %s261, 256
          %s263 = scalar_lea.vmem [#allocation2], %s262
          %s264 = smul.u32 32, %s31
          %266 = vsyncadd %s260, 0
          %s267 = smul.addr %s30, 32
          %s268 = sadd.s32 %s264, %s267
          %s269 = smul.addr %s268, 8
          %s270 = scalar_lea.hbm %s0, %s269
          %s271 = sshll.u32 %s270, 4
          %s272 = int_to_ptr.hbm [resolvable:$true] %s271
          %s273 = sshll.u32 %s263, 4
          %s274 = int_to_ptr.vmem [resolvable:$true] %s273
          %279 = dma.hbm_to_vmem [thread:$0]  %s272, 4096, %s274, %s260, 128, 128, 8
        $region36: #{tpu_custom_call.1} parent=31 // pred_fallthru
          _
      $region32: #{tpu_custom_call.1} parent=5 // pred_fallthru
        _
      %p280 = scmp.le.s32.totalorder 1, %s23
      %p281 = scmp.lt.s32.totalorder %s23, 3
      %p282 = pnand %p280, %p281
      %p283 = pneg %p282
      // Predicated region
      $region37: #{tpu_custom_call.1} parent=5 // pred_check
        _
      $region38: #{tpu_custom_call.1} parent=5 // pred_check_branch
        %285 = sbr.rel (%p282) target = $region40
      $region39: #{tpu_custom_call.1} parent=5 // pred_region
        %s286 = ssub.s32 %s23, 1
        %s287 = sand.u32 %s50, 1
        %s288 = scalar_lea.sflag [#allocation3], %s287
        %s289 = sand.u32 %s50, 1
        %s290 = smul.addr %s289, 256
        %s291 = scalar_lea.vmem [#allocation2], %s290
        // Predicated region
        $region41: #{tpu_custom_call.1} parent=39 // pred_check
          %p292 = pneg %p63
        $region42: #{tpu_custom_call.1} parent=39 // pred_check_branch
          %294 = sbr.rel (%p292) target = $region44
        $region43: #{tpu_custom_call.1} parent=39 // pred_region
          %296 = dma.done %s288, 4096
        $region44: #{tpu_custom_call.1} parent=39 // pred_fallthru
          _
        // Predicated region
        $region45: #{tpu_custom_call.1} parent=39 // pred_check
          %p297 = pneg %p84
        $region46: #{tpu_custom_call.1} parent=39 // pred_check_branch
          %299 = sbr.rel (%p297) target = $region48
        $region47: #{tpu_custom_call.1} parent=39 // pred_region
          %301 = dma.done [#allocation6], 2048
        $region48: #{tpu_custom_call.1} parent=39 // pred_fallthru
          _
        // Predicated region
        $region49: #{tpu_custom_call.1} parent=39 // pred_check
          %p302 = pneg %p105
        $region50: #{tpu_custom_call.1} parent=39 // pred_check_branch
          %304 = sbr.rel (%p302) target = $region52
        $region51: #{tpu_custom_call.1} parent=39 // pred_region
          %306 = dma.done [#allocation6], 2048
        $region52: #{tpu_custom_call.1} parent=39 // pred_fallthru
          _
        %s307 = sand.u32 %s50, 1
        %s308 = scalar_lea.sflag [#allocation3], %s307
        %s309 = sand.u32 %s50, 1
        %s310 = smul.addr %s309, 256
        %s311 = scalar_lea.vmem [#allocation2], %s310
        %p312 = pneg %p63
        %p313 = pneg %p60
        %p314 = pneg %p84
        %p315 = pneg %p81
        %p316 = pneg %p105
        %p317 = pneg %p102
        %p318 = pneg %p126
        %p319 = pneg %p123
        %p320 = pneg %p147
        %p321 = pneg %p144
        %p322 = pneg %p175
        %p323 = pneg %p172
        %s324 = sand.u32 %s162, 1
        %s325 = scalar_lea.sflag [#allocation4], %s324
        %s326 = sand.u32 %s162, 1
        %s327 = smul.addr %s326, 256
        %s328 = scalar_lea.vmem [#allocation8], %s327
        %p329 = pneg %p203
        %p330 = pneg %p200
        %s331 = sand.u32 %s190, 1
        %s332 = scalar_lea.sflag [#allocation10], %s331
        %s333 = sand.u32 %s190, 1
        %s334 = smul.addr %s333, 256
        %s335 = scalar_lea.vmem [#allocation9], %s334
        %s336 = smul.u32 32, %s33
        %s337 = smul.u32 32, %s33
        %s338 = smul.u32 32, %s33
        %v339 = vld [vmem:[%s291] sm:$0xff]
        %v340 = vld [vmem:[%s291 + $0x8] sm:$0xff]
        %v341 = vld [vmem:[%s291 + $0x10] sm:$0xff]
        %v342 = vld [vmem:[%s291 + $0x18] sm:$0xff]
        %v343 = vld [vmem:[%s291 + $0x20] sm:$0xff]
        %v344 = vld [vmem:[%s291 + $0x28] sm:$0xff]
        %v345 = vld [vmem:[%s291 + $0x30] sm:$0xff]
        %v346 = vld [vmem:[%s291 + $0x38] sm:$0xff]
        %v347 = vld [vmem:[%s291 + $0x40] sm:$0xff]
        %v348 = vld [vmem:[%s291 + $0x48] sm:$0xff]
        %v349 = vld [vmem:[%s291 + $0x50] sm:$0xff]
        %v350 = vld [vmem:[%s291 + $0x58] sm:$0xff]
        %v351 = vld [vmem:[%s291 + $0x60] sm:$0xff]
        %v352 = vld [vmem:[%s291 + $0x68] sm:$0xff]
        %v353 = vld [vmem:[%s291 + $0x70] sm:$0xff]
        %v354 = vld [vmem:[%s291 + $0x78] sm:$0xff]
        %v355 = vld [vmem:[%s291 + $0x80] sm:$0xff]
        %v356 = vld [vmem:[%s291 + $0x88] sm:$0xff]
        %v357 = vld [vmem:[%s291 + $0x90] sm:$0xff]
        %v358 = vld [vmem:[%s291 + $0x98] sm:$0xff]
        %v359 = vld [vmem:[%s291 + $0xa0] sm:$0xff]
        %v360 = vld [vmem:[%s291 + $0xa8] sm:$0xff]
        %v361 = vld [vmem:[%s291 + $0xb0] sm:$0xff]
        %v362 = vld [vmem:[%s291 + $0xb8] sm:$0xff]
        %v363 = vld [vmem:[%s291 + $0xc0] sm:$0xff]
        %v364 = vld [vmem:[%s291 + $0xc8] sm:$0xff]
        %v365 = vld [vmem:[%s291 + $0xd0] sm:$0xff]
        %v366 = vld [vmem:[%s291 + $0xd8] sm:$0xff]
        %v367 = vld [vmem:[%s291 + $0xe0] sm:$0xff]
        %v368 = vld [vmem:[%s291 + $0xe8] sm:$0xff]
        %v369 = vld [vmem:[%s291 + $0xf0] sm:$0xff]
        %v370 = vld [vmem:[%s291 + $0xf8] sm:$0xff]
        %v371 = vld [vmem:[#allocation5] sm:$0xff]
        %v372 = vld [vmem:[#allocation5 + $0x8] sm:$0xff]
        %v373 = vld [vmem:[#allocation5 + $0x10] sm:$0xff]
        %v374 = vld [vmem:[#allocation5 + $0x18] sm:$0xff]
        %v375 = vld [vmem:[#allocation5 + $0x20] sm:$0xff]
        %v376 = vld [vmem:[#allocation5 + $0x28] sm:$0xff]
        %v377 = vld [vmem:[#allocation5 + $0x30] sm:$0xff]
        %v378 = vld [vmem:[#allocation5 + $0x38] sm:$0xff]
        %v379 = vld [vmem:[#allocation5 + $0x40] sm:$0xff]
        %v380 = vld [vmem:[#allocation5 + $0x48] sm:$0xff]
        %v381 = vld [vmem:[#allocation5 + $0x50] sm:$0xff]
        %v382 = vld [vmem:[#allocation5 + $0x58] sm:$0xff]
        %v383 = vld [vmem:[#allocation5 + $0x60] sm:$0xff]
        %v384 = vld [vmem:[#allocation5 + $0x68] sm:$0xff]
        %v385 = vld [vmem:[#allocation5 + $0x70] sm:$0xff]
        %v386 = vld [vmem:[#allocation5 + $0x78] sm:$0xff]
        %v387 = vld [vmem:[%s3] sm:$0x1]
        %v389 = vperm.slane %v387, 0
        %391 = vmatpush.msra.mxu0 %v386
        %392 = vmatpush.msra.mxu0 %v385
        %393 = vmatpush.msra.mxu0 %v384
        %394 = vmatpush.msra.mxu0 %v383
        %395 = vmatpush.msra.mxu0 %v382
        %396 = vmatpush.msra.mxu0 %v381
        %397 = vmatpush.msra.mxu0 %v380
        %398 = vmatpush.msra.mxu0 %v379
        %399 = vmatpush.msra.mxu0 %v378
        %400 = vmatpush.msra.mxu0 %v377
        %401 = vmatpush.msra.mxu0 %v376
        %402 = vmatpush.msra.mxu0 %v375
        %403 = vmatpush.msra.mxu0 %v374
        %404 = vmatpush.msra.mxu0 %v373
        %405 = vmatpush.msra.mxu0 %v372
        %406 = vmatpush.msra.mxu0 %v371
        %407 = vmatmul.f32.gmra.mxu0 %v339
        %v408 = vpop.f32.mrf.mxu0
        %v409 = vadd.f32 %v389, %v408
        %410 = vmatmul.f32.gmra.mxu0 %v340
        %v411 = vpop.f32.mrf.mxu0
        %v412 = vadd.f32 %v389, %v411
        %413 = vmatmul.f32.gmra.mxu0 %v341
        %v414 = vpop.f32.mrf.mxu0
        %v415 = vadd.f32 %v389, %v414
        %416 = vmatmul.f32.gmra.mxu0 %v342
        %v417 = vpop.f32.mrf.mxu0
        %v418 = vadd.f32 %v389, %v417
        %419 = vmatmul.f32.gmra.mxu0 %v343
        %v420 = vpop.f32.mrf.mxu0
        %v421 = vadd.f32 %v389, %v420
        %422 = vmatmul.f32.gmra.mxu0 %v344
        %v423 = vpop.f32.mrf.mxu0
        %v424 = vadd.f32 %v389, %v423
        %425 = vmatmul.f32.gmra.mxu0 %v345
        %v426 = vpop.f32.mrf.mxu0
        %v427 = vadd.f32 %v389, %v426
        %428 = vmatmul.f32.gmra.mxu0 %v346
        %v429 = vpop.f32.mrf.mxu0
        %v430 = vadd.f32 %v389, %v429
        %431 = vmatmul.f32.gmra.mxu0 %v347
        %v432 = vpop.f32.mrf.mxu0
        %v433 = vadd.f32 %v389, %v432
        %434 = vmatmul.f32.gmra.mxu0 %v348
        %v435 = vpop.f32.mrf.mxu0
        %v436 = vadd.f32 %v389, %v435
        %437 = vmatmul.f32.gmra.mxu0 %v349
        %v438 = vpop.f32.mrf.mxu0
        %v439 = vadd.f32 %v389, %v438
        %440 = vmatmul.f32.gmra.mxu0 %v350
        %v441 = vpop.f32.mrf.mxu0
        %v442 = vadd.f32 %v389, %v441
        %443 = vmatmul.f32.gmra.mxu0 %v351
        %v444 = vpop.f32.mrf.mxu0
        %v445 = vadd.f32 %v389, %v444
        %446 = vmatmul.f32.gmra.mxu0 %v352
        %v447 = vpop.f32.mrf.mxu0
        %v448 = vadd.f32 %v389, %v447
        %449 = vmatmul.f32.gmra.mxu0 %v353
        %v450 = vpop.f32.mrf.mxu0
        %v451 = vadd.f32 %v389, %v450
        %452 = vmatmul.f32.gmra.mxu0 %v354
        %v453 = vpop.f32.mrf.mxu0
        %v454 = vadd.f32 %v389, %v453
        %455 = vmatmul.f32.gmra.mxu0 %v355
        %v456 = vpop.f32.mrf.mxu0
        %v457 = vadd.f32 %v389, %v456
        %458 = vmatmul.f32.gmra.mxu0 %v356
        %v459 = vpop.f32.mrf.mxu0
        %v460 = vadd.f32 %v389, %v459
        %461 = vmatmul.f32.gmra.mxu0 %v357
        %v462 = vpop.f32.mrf.mxu0
        %v463 = vadd.f32 %v389, %v462
        %464 = vmatmul.f32.gmra.mxu0 %v358
        %v465 = vpop.f32.mrf.mxu0
        %v466 = vadd.f32 %v389, %v465
        %467 = vmatmul.f32.gmra.mxu0 %v359
        %v468 = vpop.f32.mrf.mxu0
        %v469 = vadd.f32 %v389, %v468
        %470 = vmatmul.f32.gmra.mxu0 %v360
        %v471 = vpop.f32.mrf.mxu0
        %v472 = vadd.f32 %v389, %v471
        %473 = vmatmul.f32.gmra.mxu0 %v361
        %v474 = vpop.f32.mrf.mxu0
        %v475 = vadd.f32 %v389, %v474
        %476 = vmatmul.f32.gmra.mxu0 %v362
        %v477 = vpop.f32.mrf.mxu0
        %v478 = vadd.f32 %v389, %v477
        %479 = vmatmul.f32.gmra.mxu0 %v363
        %v480 = vpop.f32.mrf.mxu0
        %v481 = vadd.f32 %v389, %v480
        %482 = vmatmul.f32.gmra.mxu0 %v364
        %v483 = vpop.f32.mrf.mxu0
        %v484 = vadd.f32 %v389, %v483
        %485 = vmatmul.f32.gmra.mxu0 %v365
        %v486 = vpop.f32.mrf.mxu0
        %v487 = vadd.f32 %v389, %v486
        %488 = vmatmul.f32.gmra.mxu0 %v366
        %v489 = vpop.f32.mrf.mxu0
        %v490 = vadd.f32 %v389, %v489
        %491 = vmatmul.f32.gmra.mxu0 %v367
        %v492 = vpop.f32.mrf.mxu0
        %v493 = vadd.f32 %v389, %v492
        %494 = vmatmul.f32.gmra.mxu0 %v368
        %v495 = vpop.f32.mrf.mxu0
        %v496 = vadd.f32 %v389, %v495
        %497 = vmatmul.f32.gmra.mxu0 %v369
        %v498 = vpop.f32.mrf.mxu0
        %v499 = vadd.f32 %v389, %v498
        %500 = vmatmul.f32.gmra.mxu0 %v370
        %v501 = vpop.f32.mrf.mxu0
        %v502 = vadd.f32 %v389, %v501
        %503 = vdwg.mxu0
        %504 = vst [vmem:[%s328] sm:$0xff] %v409
        %505 = vst [vmem:[%s328 + $0x8] sm:$0xff] %v412
        %506 = vst [vmem:[%s328 + $0x10] sm:$0xff] %v415
        %507 = vst [vmem:[%s328 + $0x18] sm:$0xff] %v418
        %508 = vst [vmem:[%s328 + $0x20] sm:$0xff] %v421
        %509 = vst [vmem:[%s328 + $0x28] sm:$0xff] %v424
        %510 = vst [vmem:[%s328 + $0x30] sm:$0xff] %v427
        %511 = vst [vmem:[%s328 + $0x38] sm:$0xff] %v430
        %512 = vst [vmem:[%s328 + $0x40] sm:$0xff] %v433
        %513 = vst [vmem:[%s328 + $0x48] sm:$0xff] %v436
        %514 = vst [vmem:[%s328 + $0x50] sm:$0xff] %v439
        %515 = vst [vmem:[%s328 + $0x58] sm:$0xff] %v442
        %516 = vst [vmem:[%s328 + $0x60] sm:$0xff] %v445
        %517 = vst [vmem:[%s328 + $0x68] sm:$0xff] %v448
        %518 = vst [vmem:[%s328 + $0x70] sm:$0xff] %v451
        %519 = vst [vmem:[%s328 + $0x78] sm:$0xff] %v454
        %520 = vst [vmem:[%s328 + $0x80] sm:$0xff] %v457
        %521 = vst [vmem:[%s328 + $0x88] sm:$0xff] %v460
        %522 = vst [vmem:[%s328 + $0x90] sm:$0xff] %v463
        %523 = vst [vmem:[%s328 + $0x98] sm:$0xff] %v466
        %524 = vst [vmem:[%s328 + $0xa0] sm:$0xff] %v469
        %525 = vst [vmem:[%s328 + $0xa8] sm:$0xff] %v472
        %526 = vst [vmem:[%s328 + $0xb0] sm:$0xff] %v475
        %527 = vst [vmem:[%s328 + $0xb8] sm:$0xff] %v478
        %528 = vst [vmem:[%s328 + $0xc0] sm:$0xff] %v481
        %529 = vst [vmem:[%s328 + $0xc8] sm:$0xff] %v484
        %530 = vst [vmem:[%s328 + $0xd0] sm:$0xff] %v487
        %531 = vst [vmem:[%s328 + $0xd8] sm:$0xff] %v490
        %532 = vst [vmem:[%s328 + $0xe0] sm:$0xff] %v493
        %533 = vst [vmem:[%s328 + $0xe8] sm:$0xff] %v496
        %534 = vst [vmem:[%s328 + $0xf0] sm:$0xff] %v499
        %535 = vst [vmem:[%s328 + $0xf8] sm:$0xff] %v502
        %v536 = vld [vmem:[#allocation7] sm:$0xff]
        %v537 = vld [vmem:[#allocation7 + $0x8] sm:$0xff]
        %v538 = vld [vmem:[#allocation7 + $0x10] sm:$0xff]
        %v539 = vld [vmem:[#allocation7 + $0x18] sm:$0xff]
        %v540 = vld [vmem:[#allocation7 + $0x20] sm:$0xff]
        %v541 = vld [vmem:[#allocation7 + $0x28] sm:$0xff]
        %v542 = vld [vmem:[#allocation7 + $0x30] sm:$0xff]
        %v543 = vld [vmem:[#allocation7 + $0x38] sm:$0xff]
        %v544 = vld [vmem:[#allocation7 + $0x40] sm:$0xff]
        %v545 = vld [vmem:[#allocation7 + $0x48] sm:$0xff]
        %v546 = vld [vmem:[#allocation7 + $0x50] sm:$0xff]
        %v547 = vld [vmem:[#allocation7 + $0x58] sm:$0xff]
        %v548 = vld [vmem:[#allocation7 + $0x60] sm:$0xff]
        %v549 = vld [vmem:[#allocation7 + $0x68] sm:$0xff]
        %v550 = vld [vmem:[#allocation7 + $0x70] sm:$0xff]
        %v551 = vld [vmem:[#allocation7 + $0x78] sm:$0xff]
        %v552 = vld [vmem:[%s4] sm:$0x1]
        %v554 = vperm.slane %v552, 0
        %556 = vmatpush.msra.mxu0 %v551
        %557 = vmatpush.msra.mxu0 %v550
        %558 = vmatpush.msra.mxu0 %v549
        %559 = vmatpush.msra.mxu0 %v548
        %560 = vmatpush.msra.mxu0 %v547
        %561 = vmatpush.msra.mxu0 %v546
        %562 = vmatpush.msra.mxu0 %v545
        %563 = vmatpush.msra.mxu0 %v544
        %564 = vmatpush.msra.mxu0 %v543
        %565 = vmatpush.msra.mxu0 %v542
        %566 = vmatpush.msra.mxu0 %v541
        %567 = vmatpush.msra.mxu0 %v540
        %568 = vmatpush.msra.mxu0 %v539
        %569 = vmatpush.msra.mxu0 %v538
        %570 = vmatpush.msra.mxu0 %v537
        %571 = vmatpush.msra.mxu0 %v536
        %572 = vmatmul.f32.gmra.mxu0 %v339
        %v573 = vpop.f32.mrf.mxu0
        %v574 = vadd.f32 %v554, %v573
        %575 = vmatmul.f32.gmra.mxu0 %v340
        %v576 = vpop.f32.mrf.mxu0
        %v577 = vadd.f32 %v554, %v576
        %578 = vmatmul.f32.gmra.mxu0 %v341
        %v579 = vpop.f32.mrf.mxu0
        %v580 = vadd.f32 %v554, %v579
        %581 = vmatmul.f32.gmra.mxu0 %v342
        %v582 = vpop.f32.mrf.mxu0
        %v583 = vadd.f32 %v554, %v582
        %584 = vmatmul.f32.gmra.mxu0 %v343
        %v585 = vpop.f32.mrf.mxu0
        %v586 = vadd.f32 %v554, %v585
        %587 = vmatmul.f32.gmra.mxu0 %v344
        %v588 = vpop.f32.mrf.mxu0
        %v589 = vadd.f32 %v554, %v588
        %590 = vmatmul.f32.gmra.mxu0 %v345
        %v591 = vpop.f32.mrf.mxu0
        %v592 = vadd.f32 %v554, %v591
        %593 = vmatmul.f32.gmra.mxu0 %v346
        %v594 = vpop.f32.mrf.mxu0
        %v595 = vadd.f32 %v554, %v594
        %596 = vmatmul.f32.gmra.mxu0 %v347
        %v597 = vpop.f32.mrf.mxu0
        %v598 = vadd.f32 %v554, %v597
        %599 = vmatmul.f32.gmra.mxu0 %v348
        %v600 = vpop.f32.mrf.mxu0
        %v601 = vadd.f32 %v554, %v600
        %602 = vmatmul.f32.gmra.mxu0 %v349
        %v603 = vpop.f32.mrf.mxu0
        %v604 = vadd.f32 %v554, %v603
        %605 = vmatmul.f32.gmra.mxu0 %v350
        %v606 = vpop.f32.mrf.mxu0
        %v607 = vadd.f32 %v554, %v606
        %608 = vmatmul.f32.gmra.mxu0 %v351
        %v609 = vpop.f32.mrf.mxu0
        %v610 = vadd.f32 %v554, %v609
        %611 = vmatmul.f32.gmra.mxu0 %v352
        %v612 = vpop.f32.mrf.mxu0
        %v613 = vadd.f32 %v554, %v612
        %614 = vmatmul.f32.gmra.mxu0 %v353
        %v615 = vpop.f32.mrf.mxu0
        %v616 = vadd.f32 %v554, %v615
        %617 = vmatmul.f32.gmra.mxu0 %v354
        %v618 = vpop.f32.mrf.mxu0
        %v619 = vadd.f32 %v554, %v618
        %620 = vmatmul.f32.gmra.mxu0 %v355
        %v621 = vpop.f32.mrf.mxu0
        %v622 = vadd.f32 %v554, %v621
        %623 = vmatmul.f32.gmra.mxu0 %v356
        %v624 = vpop.f32.mrf.mxu0
        %v625 = vadd.f32 %v554, %v624
        %626 = vmatmul.f32.gmra.mxu0 %v357
        %v627 = vpop.f32.mrf.mxu0
        %v628 = vadd.f32 %v554, %v627
        %629 = vmatmul.f32.gmra.mxu0 %v358
        %v630 = vpop.f32.mrf.mxu0
        %v631 = vadd.f32 %v554, %v630
        %632 = vmatmul.f32.gmra.mxu0 %v359
        %v633 = vpop.f32.mrf.mxu0
        %v634 = vadd.f32 %v554, %v633
        %635 = vmatmul.f32.gmra.mxu0 %v360
        %v636 = vpop.f32.mrf.mxu0
        %v637 = vadd.f32 %v554, %v636
        %638 = vmatmul.f32.gmra.mxu0 %v361
        %v639 = vpop.f32.mrf.mxu0
        %v640 = vadd.f32 %v554, %v639
        %641 = vmatmul.f32.gmra.mxu0 %v362
        %v642 = vpop.f32.mrf.mxu0
        %v643 = vadd.f32 %v554, %v642
        %644 = vmatmul.f32.gmra.mxu0 %v363
        %v645 = vpop.f32.mrf.mxu0
        %v646 = vadd.f32 %v554, %v645
        %647 = vmatmul.f32.gmra.mxu0 %v364
        %v648 = vpop.f32.mrf.mxu0
        %v649 = vadd.f32 %v554, %v648
        %650 = vmatmul.f32.gmra.mxu0 %v365
        %v651 = vpop.f32.mrf.mxu0
        %v652 = vadd.f32 %v554, %v651
        %653 = vmatmul.f32.gmra.mxu0 %v366
        %v654 = vpop.f32.mrf.mxu0
        %v655 = vadd.f32 %v554, %v654
        %656 = vmatmul.f32.gmra.mxu0 %v367
        %v657 = vpop.f32.mrf.mxu0
        %v658 = vadd.f32 %v554, %v657
        %659 = vmatmul.f32.gmra.mxu0 %v368
        %v660 = vpop.f32.mrf.mxu0
        %v661 = vadd.f32 %v554, %v660
        %662 = vmatmul.f32.gmra.mxu0 %v369
        %v663 = vpop.f32.mrf.mxu0
        %v664 = vadd.f32 %v554, %v663
        %665 = vmatmul.f32.gmra.mxu0 %v370
        %v666 = vpop.f32.mrf.mxu0
        %v667 = vadd.f32 %v554, %v666
        %668 = vdwg.mxu0
        %669 = vst [vmem:[%s335] sm:$0xff] %v574
        %670 = vst [vmem:[%s335 + $0x8] sm:$0xff] %v577
        %671 = vst [vmem:[%s335 + $0x10] sm:$0xff] %v580
        %672 = vst [vmem:[%s335 + $0x18] sm:$0xff] %v583
        %673 = vst [vmem:[%s335 + $0x20] sm:$0xff] %v586
        %674 = vst [vmem:[%s335 + $0x28] sm:$0xff] %v589
        %675 = vst [vmem:[%s335 + $0x30] sm:$0xff] %v592
        %676 = vst [vmem:[%s335 + $0x38] sm:$0xff] %v595
        %677 = vst [vmem:[%s335 + $0x40] sm:$0xff] %v598
        %678 = vst [vmem:[%s335 + $0x48] sm:$0xff] %v601
        %679 = vst [vmem:[%s335 + $0x50] sm:$0xff] %v604
        %680 = vst [vmem:[%s335 + $0x58] sm:$0xff] %v607
        %681 = vst [vmem:[%s335 + $0x60] sm:$0xff] %v610
        %682 = vst [vmem:[%s335 + $0x68] sm:$0xff] %v613
        %683 = vst [vmem:[%s335 + $0x70] sm:$0xff] %v616
        %684 = vst [vmem:[%s335 + $0x78] sm:$0xff] %v619
        %685 = vst [vmem:[%s335 + $0x80] sm:$0xff] %v622
        %686 = vst [vmem:[%s335 + $0x88] sm:$0xff] %v625
        %687 = vst [vmem:[%s335 + $0x90] sm:$0xff] %v628
        %688 = vst [vmem:[%s335 + $0x98] sm:$0xff] %v631
        %689 = vst [vmem:[%s335 + $0xa0] sm:$0xff] %v634
        %690 = vst [vmem:[%s335 + $0xa8] sm:$0xff] %v637
        %691 = vst [vmem:[%s335 + $0xb0] sm:$0xff] %v640
        %692 = vst [vmem:[%s335 + $0xb8] sm:$0xff] %v643
        %693 = vst [vmem:[%s335 + $0xc0] sm:$0xff] %v646
        %694 = vst [vmem:[%s335 + $0xc8] sm:$0xff] %v649
        %695 = vst [vmem:[%s335 + $0xd0] sm:$0xff] %v652
        %696 = vst [vmem:[%s335 + $0xd8] sm:$0xff] %v655
        %697 = vst [vmem:[%s335 + $0xe0] sm:$0xff] %v658
        %698 = vst [vmem:[%s335 + $0xe8] sm:$0xff] %v661
        %699 = vst [vmem:[%s335 + $0xf0] sm:$0xff] %v664
        %700 = vst [vmem:[%s335 + $0xf8] sm:$0xff] %v667
        %s701 = sand.u32 %s162, 1
        %s702 = scalar_lea.sflag [#allocation4], %s701
        %s703 = sand.u32 %s162, 1
        %s704 = smul.addr %s703, 256
        %s705 = scalar_lea.vmem [#allocation8], %s704
        %s706 = sand.u32 %s190, 1
        %s707 = scalar_lea.sflag [#allocation10], %s706
        %s708 = sand.u32 %s190, 1
        %s709 = smul.addr %s708, 256
        %s710 = scalar_lea.vmem [#allocation9], %s709
        // Predicated region
        $region53: #{tpu_custom_call.1} parent=39 // pred_check
          %p711 = pneg %p172
        $region54: #{tpu_custom_call.1} parent=39 // pred_check_branch
          %713 = sbr.rel (%p711) target = $region56
        $region55: #{tpu_custom_call.1} parent=39 // pred_region
          %s714 = smul.u32 32, %s33
          %716 = vsyncadd %s702, 0
          %s717 = smul.addr %s32, 32
          %s718 = sadd.s32 %s714, %s717
          %s719 = smul.addr %s718, 8
          %s720 = scalar_lea.hbm %s5, %s719
          %s721 = sshll.u32 %s705, 4
          %s722 = int_to_ptr.vmem [resolvable:$true] %s721
          %s723 = sshll.u32 %s720, 4
          %s724 = int_to_ptr.hbm [resolvable:$true] %s723
          %729 = dma.vmem_to_hbm [thread:$0]  %s722, 4096, %s724, %s702, 128, 128, 8
        $region56: #{tpu_custom_call.1} parent=39 // pred_fallthru
          _
        // Predicated region
        $region57: #{tpu_custom_call.1} parent=39 // pred_check
          %p730 = pneg %p200
        $region58: #{tpu_custom_call.1} parent=39 // pred_check_branch
          %732 = sbr.rel (%p730) target = $region60
        $region59: #{tpu_custom_call.1} parent=39 // pred_region
          %s733 = smul.u32 32, %s33
          %735 = vsyncadd %s707, 0
          %s736 = smul.addr %s32, 32
          %s737 = sadd.s32 %s733, %s736
          %s738 = smul.addr %s737, 8
          %s739 = scalar_lea.hbm %s6, %s738
          %s740 = sshll.u32 %s710, 4
          %s741 = int_to_ptr.vmem [resolvable:$true] %s740
          %s742 = sshll.u32 %s739, 4
          %s743 = int_to_ptr.hbm [resolvable:$true] %s742
          %748 = dma.vmem_to_hbm [thread:$0]  %s741, 4096, %s743, %s707, 128, 128, 8
        $region60: #{tpu_custom_call.1} parent=39 // pred_fallthru
          _
      $region40: #{tpu_custom_call.1} parent=5 // pred_fallthru
        _
      %p749 = scmp.le.s32.totalorder 2, %s23
      // Predicated region
      $region61: #{tpu_custom_call.1} parent=5 // pred_check
        %p750 = pneg %p749
      $region62: #{tpu_custom_call.1} parent=5 // pred_check_branch
        %752 = sbr.rel (%p750) target = $region64
      $region63: #{tpu_custom_call.1} parent=5 // pred_region
        %s753 = ssub.s32 %s23, 2
        // Predicated region
        $region65: #{tpu_custom_call.1} parent=63 // pred_check
          %p754 = pneg %p178
        $region66: #{tpu_custom_call.1} parent=63 // pred_check_branch
          %756 = sbr.rel (%p754) target = $region68
        $region67: #{tpu_custom_call.1} parent=63 // pred_region
          %s757 = sand.u32 %s163, 1
          %s758 = scalar_lea.sflag [#allocation4], %s757
          %s759 = sand.u32 %s163, 1
          %s760 = smul.addr %s759, 256
          %s761 = scalar_lea.vmem [#allocation8], %s760
          %763 = dma.done %s758, 4096
        $region68: #{tpu_custom_call.1} parent=63 // pred_fallthru
          _
        // Predicated region
        $region69: #{tpu_custom_call.1} parent=63 // pred_check
          %p764 = pneg %p206
        $region70: #{tpu_custom_call.1} parent=63 // pred_check_branch
          %766 = sbr.rel (%p764) target = $region72
        $region71: #{tpu_custom_call.1} parent=63 // pred_region
          %s767 = sand.u32 %s191, 1
          %s768 = scalar_lea.sflag [#allocation10], %s767
          %s769 = sand.u32 %s191, 1
          %s770 = smul.addr %s769, 256
          %s771 = scalar_lea.vmem [#allocation9], %s770
          %773 = dma.done %s768, 4096
        $region72: #{tpu_custom_call.1} parent=63 // pred_fallthru
          _
      $region64: #{tpu_custom_call.1} parent=5 // pred_fallthru
        _
    $region6: #{tpu_custom_call.1} parent=1 // loop_footer
      %s27 = sadd.s32 1, %s23
    $region7: #{tpu_custom_call.1} parent=1 // loop_footer_branch
      %22 = sbr.rel target = $region3
    $region8: #{tpu_custom_call.1} parent=1 // loop_exit
      _
    %774 = vsyncpa [#allocation3], 1
    %s775 = scalar_lea.sflag [#allocation3], 1
    %776 = vsyncpa %s775, 1
    %777 = vsyncpa [#allocation6], 1
    %778 = vsyncpa [#allocation4], 1
    %s779 = scalar_lea.sflag [#allocation4], 1
    %780 = vsyncpa %s779, 1
    %781 = vsyncpa [#allocation10], 1
    %s782 = scalar_lea.sflag [#allocation10], 1
    %783 = vsyncpa %s782, 1

</llo_original>
